<compile_context>
chip_gen: v7x
topology: tpu7x:2x2x1
jax: 0.10.0
libtpu: 0.0.40
codegen_flags: <defaults>
</compile_context>

<pallas_src>
import jax
import jax.numpy as jnp
from jax import lax
from jax.experimental import pallas as pl
from jax.experimental.pallas import tpu as pltpu

EPS = 1e-5
OUT_PAD = 8          # final 1-wide layer padded to 8 rows of the transposed output


def _round_up(x, m):
    return ((x + m - 1) // m) * m


def _chip_tile_defaults():
    """Per-generation (tile_rows, vmem_limit_bytes)."""
    try:
        vmem = int(pltpu.get_tpu_info().vmem_capacity_bytes)
    except Exception:
        vmem = 0
    if vmem >= 96 * 1024 * 1024:          # v4 / v5e / v6e class (128 MiB VMEM)
        return 4096, 96 * 1024 * 1024
    if vmem >= 48 * 1024 * 1024:          # v7x class (64 MiB per TensorCore)
        return 2048, 44 * 1024 * 1024
    return 1024, 32 * 1024 * 1024          # unknown / small: conservative


# ----------------------------- in-kernel helpers -----------------------------

def _one_hot(seg_ref, num_segments):
    """[TE, Bp] one-hot graph-membership matrix built in-kernel (f32, exact)."""
    seg = seg_ref[...]                                               # [TE, 1] int32
    ids = lax.broadcasted_iota(jnp.int32, (seg.shape[0], num_segments), 1)
    return (ids == seg).astype(jnp.float32)


def _hidden(x_bf16, w_ref, b_ref):
    """bf16 x bf16 matmul with f32 accumulation, f32 bias."""
    return jnp.dot(x_bf16, w_ref[...], preferred_element_type=jnp.float32) + b_ref[...]


def _seg_sum(S, h):
    """Per-graph column sums: S^T @ h -> [Bp, C] (f32, no transpose materialized)."""
    return lax.dot_general(S, h, (((0,), (0,)), ((), ())),
                           preferred_element_type=jnp.float32)


def _scatter(S, table_ref):
    """Scatter per-graph params to rows via the one-hot matmul (exact f32 gather).

    TODO(synk): replace with an in-kernel dynamic row gather once jnp.take /
    dynamic_gather lowering on [Bp, C] tables is dependable; the matmul cost
    scales with the number of graphs.
    """
    return jnp.dot(S, table_ref[...], preferred_element_type=jnp.float32)


# --------------------------------- kernels -----------------------------------

def _stats1_kernel(x_ref, seg_ref, w1_ref, b1_ref, ssum_ref, ssq_ref, cnt_ref):
    @pl.when(pl.program_id(1) == 0)
    def _():
        ssum_ref[...] = jnp.zeros_like(ssum_ref)
        ssq_ref[...] = jnp.zeros_like(ssq_ref)
        cnt_ref[...] = jnp.zeros_like(cnt_ref)
    h1 = _hidden(x_ref[...], w1_ref, b1_ref)                         # [TE, d1] f32
    S = _one_hot(seg_ref, ssum_ref.shape[1])                         # [TE, Bp]
    ssum_ref[...] += _seg_sum(S, h1)[None]
    ssq_ref[...] += _seg_sum(S, h1 * h1)[None]
    cnt_ref[...] += jnp.sum(S, axis=0)[None, :, None]                # per-graph edge counts


def _stats2_kernel(x_ref, seg_ref, w1_ref, b1_ref, sc1_ref, sh1_ref,
                   w2_ref, b2_ref, ssum_ref, ssq_ref):
    @pl.when(pl.program_id(1) == 0)
    def _():
        ssum_ref[...] = jnp.zeros_like(ssum_ref)
        ssq_ref[...] = jnp.zeros_like(ssq_ref)
    S = _one_hot(seg_ref, sc1_ref.shape[0])
    h1 = _hidden(x_ref[...], w1_ref, b1_ref)
    h1 = jnp.maximum(h1 * _scatter(S, sc1_ref) + _scatter(S, sh1_ref), 0.0)
    # TODO(synk): Dropout(p=0.5) is identity in eval mode; training dropout not implemented.
    h2 = _hidden(h1.astype(jnp.bfloat16), w2_ref, b2_ref)            # [TE, dh] f32
    ssum_ref[...] += _seg_sum(S, h2)[None]
    ssq_ref[...] += _seg_sum(S, h2 * h2)[None]


def _final_kernel(x_ref, seg_ref, w1_ref, b1_ref, sc1_ref, sh1_ref,
                  w2_ref, b2_ref, sc2_ref, sh2_ref, w3t_ref, b3t_ref, o_ref):
    S = _one_hot(seg_ref, sc1_ref.shape[0])
    h1 = _hidden(x_ref[...], w1_ref, b1_ref)
    h1 = jnp.maximum(h1 * _scatter(S, sc1_ref) + _scatter(S, sh1_ref), 0.0)
    h2 = _hidden(h1.astype(jnp.bfloat16), w2_ref, b2_ref)
    h2 = jnp.maximum(h2 * _scatter(S, sc2_ref) + _scatter(S, sh2_ref), 0.0)
    # Transposed (lane-dense) final layer: W3^T [OUT_PAD, dh] against h2 with a
    # transposed-RHS contraction -> [OUT_PAD, TE]; output stores use full 128 lanes.
    o = lax.dot_general(w3t_ref[...], h2.astype(jnp.bfloat16),
                        (((1,), (1,)), ((), ())),
                        preferred_element_type=jnp.float32) + b3t_ref[...]
    o_ref[...] = o.astype(o_ref.dtype)


# ------------------------------ params & wrapper ------------------------------

def init_extractor_params(key, hidden_size, learn_edge_att=True):
    """Deterministic synthetic weights with PyTorch nn.Linear-style init.

    W1/W2 stored [in, out] in bf16 (MXU operand dtype); biases f32.  The final
    1-wide layer is stored transposed and padded to OUT_PAD rows for the
    lane-dense transposed output.
    """
    if learn_edge_att:
        dims = (hidden_size * 2, hidden_size * 4, hidden_size, 1)
    else:
        dims = (hidden_size * 1, hidden_size * 2, hidden_size, 1)
    ks = jax.random.split(key, 6)

    def lin(kw, kb, fan_in, fan_out):
        bound = 1.0 / (fan_in ** 0.5)
        w = jax.random.uniform(kw, (fan_in, fan_out), jnp.float32, -bound, bound)
        b = jax.random.uniform(kb, (1, fan_out), jnp.float32, -bound, bound)
        return w, b

    w1, b1 = lin(ks[0], ks[1], dims[0], dims[1])
    w2, b2 = lin(ks[2], ks[3], dims[1], dims[2])
    w3, b3 = lin(ks[4], ks[5], dims[2], dims[3])
    w3t = jnp.zeros((OUT_PAD, dims[2]), jnp.float32).at[0, :].set(w3[:, 0])
    b3t = jnp.zeros((OUT_PAD, 1), jnp.float32).at[0, 0].set(b3[0, 0])
    return dict(w1=w1.astype(jnp.bfloat16), b1=b1,
                w2=w2.astype(jnp.bfloat16), b2=b2,
                w3t=w3t.astype(jnp.bfloat16), b3t=b3t)


def extractor_mlp_forward(params, emb, edge_index, batch, num_graphs,
                          learn_edge_att=True, tile_e=None):
    # bf16 BEFORE the gather/concat -> halves the [E, 2H] HBM slab that the three
    # passes read.
    # TODO(synk): gather emb rows in-kernel (scalar-prefetch col/row + VMEM-resident
    # emb) so the [E, 2H] slab never exists in HBM at all.
    emb_b = emb.astype(jnp.bfloat16)
    if learn_edge_att:
        col, row = edge_index[0], edge_index[1]
        x = jnp.concatenate([emb_b[col], emb_b[row]], axis=-1)        # [E, 2H] bf16
        seg = batch[col]
    else:
        x = emb_b
        seg = batch

    rows = x.shape[0]
    seg = seg.astype(jnp.int32)

    w1, b1 = params["w1"], params["b1"]
    w2, b2 = params["w2"], params["b2"]
    w3t, b3t = params["w3t"], params["b3t"]
    d_in, d1 = w1.shape
    dh = w2.shape[1]

    # Pad graph count to a sublane multiple; reserve id `num_graphs` for padded rows
    # so row padding never pollutes a real graph's statistics.
    b_pad = max(8, _round_up(num_graphs + 1, 8))
    pad_id = num_graphs

    # ---- per-generation tile / VMEM-limit selection ----
    def_te, vmem_limit = _chip_tile_defaults()
    cap = tile_e if tile_e is not None else def_te
    # keep the in-kernel one-hot [te, b_pad] + f32 intermediates bounded
    cap = min(cap, max(128, (2 * 1024 * 1024) // b_pad))
    cap = max(128, (cap // 128) * 128)
    if rows <= cap:
        te = max(8, _round_up(rows, 8))
        rows_pad = te
        nc = 1                        # single tile -> no core split needed
    else:
        te = cap
        rows_pad = _round_up(rows, 2 * te)
        nc = 2                        # 2-way split of tiles for v7x dual TensorCores
    nt = rows_pad // te
    ntpc = nt // nc

    if rows_pad != rows:
        x = jnp.pad(x, ((0, rows_pad - rows), (0, 0)))
        seg = jnp.pad(seg, (0, rows_pad - rows), constant_values=pad_id)
    seg2d = seg[:, None]                                              # [rows_pad, 1] int32

    cp_stats = pltpu.CompilerParams(dimension_semantics=("parallel", "arbitrary"),
                                    vmem_limit_bytes=vmem_limit)
    cp_final = pltpu.CompilerParams(dimension_semantics=("parallel",),
                                    vmem_limit_bytes=vmem_limit)

    def row2(width):      # edge-tile spec, 2-D stats grid (core, tile)
        return pl.BlockSpec((te, width), lambda c, t: (c * ntpc + t, 0))

    def const2(a):        # DMA'd once, VMEM-resident across grid steps
        return pl.BlockSpec(a.shape, lambda c, t: (0, 0))

    def row1(width):      # edge-tile spec, 1-D final grid
        return pl.BlockSpec((te, width), lambda t: (t, 0))

    def const1(a):
        return pl.BlockSpec(a.shape, lambda t: (0, 0))

    def acc_spec(c_dim):  # per-core accumulator slice (constant over the tile axis)
        return pl.BlockSpec((1, b_pad, c_dim), lambda c, t: (c, 0, 0))

    # ---- pass 1: per-graph sum / sum-of-squares of h1 (+ per-graph edge counts) ----
    ssum1, ssq1, cnt = pl.pallas_call(
        _stats1_kernel, grid=(nc, ntpc),
        in_specs=[row2(d_in), row2(1), const2(w1), const2(b1)],
        out_specs=(acc_spec(d1), acc_spec(d1), acc_spec(128)),
        out_shape=(jax.ShapeDtypeStruct((nc, b_pad, d1), jnp.float32),
                   jax.ShapeDtypeStruct((nc, b_pad, d1), jnp.float32),
                   jax.ShapeDtypeStruct((nc, b_pad, 128), jnp.float32)),
        compiler_params=cp_stats,
    )(x, seg2d, w1, b1)

    counts = cnt[:, :, 0].sum(axis=0)                                 # [Bp]
    cinv = jnp.where(counts > 0, 1.0 / jnp.maximum(counts, 1.0), 0.0)

    def _tables(ssum, ssq):
        # per-graph InstanceNorm (affine=False, biased var) scale/shift tables, f32
        s = ssum.sum(axis=0)
        q = ssq.sum(axis=0)
        mean = s * cinv[:, None]
        var = jnp.maximum(q * cinv[:, None] - mean * mean, 0.0)       # guard cancellation
        scale = lax.rsqrt(var + EPS)
        return scale, -mean * scale

    sc1, sh1 = _tables(ssum1, ssq1)                                   # [Bp, d1] each

    # ---- pass 2: per-graph stats of h2 (recompute h1; cheaper than HBM round-trip) ----
    ssum2, ssq2 = pl.pallas_call(
        _stats2_kernel, grid=(nc, ntpc),
        in_specs=[row2(d_in), row2(1), const2(w1), const2(b1),
                  const2(sc1), const2(sh1), const2(w2), const2(b2)],
        out_specs=(acc_spec(dh), acc_spec(dh)),
        out_shape=(jax.ShapeDtypeStruct((nc, b_pad, dh), jnp.float32),
                   jax.ShapeDtypeStruct((nc, b_pad, dh), jnp.float32)),
        compiler_params=cp_stats,
    )(x, seg2d, w1, b1, sc1, sh1, w2, b2)

    sc2, sh2 = _tables(ssum2, ssq2)                                   # [Bp, dh] each

    # ---- pass 3: full MLP, lane-dense transposed output; edge tiles run parallel ----
    out_t = pl.pallas_call(
        _final_kernel, grid=(nt,),
        in_specs=[row1(d_in), row1(1), const1(w1), const1(b1),
                  const1(sc1), const1(sh1), const1(w2), const1(b2),
                  const1(sc2), const1(sh2), const1(w3t), const1(b3t)],
        out_specs=pl.BlockSpec((OUT_PAD, te), lambda t: (0, t)),
        out_shape=jax.ShapeDtypeStruct((OUT_PAD, rows_pad), jnp.float32),
        compiler_params=cp_final,
    )(x, seg2d, w1, b1, sc1, sh1, w2, b2, sc2, sh2, w3t, b3t)

    return out_t[0, :rows][:, None]                                   # att_log_logits [E, 1]


if __name__ == "__main__":
    key = jax.random.PRNGKey(0)
    k_emb, k_param, kc, kr = jax.random.split(key, 4)

    hidden_size = 64                  # 2H = 128 -> lane-dense first layer
    num_graphs = 4
    nodes_per_graph = 16
    N = num_graphs * nodes_per_graph
    E = 512                           # small, but enough tiles to exercise the grid

    emb = jax.random.normal(k_emb, (N, hidden_size), jnp.float32)
    batch = jnp.repeat(jnp.arange(num_graphs, dtype=jnp.int32), nodes_per_graph)

    # edges stay within a graph (graph g owns nodes [16g, 16(g+1)) )
    epg = E // num_graphs
    offs = (jnp.arange(num_graphs, dtype=jnp.int32) * nodes_per_graph)[:, None]
    col = (jax.random.randint(kc, (num_graphs, epg), 0, nodes_per_graph) + offs
           ).reshape(-1).astype(jnp.int32)
    row = (jax.random.randint(kr, (num_graphs, epg), 0, nodes_per_graph) + offs
           ).reshape(-1).astype(jnp.int32)
    edge_index = jnp.stack([col, row])                                # [2, E]

    params = init_extractor_params(k_param, hidden_size, learn_edge_att=True)
    att_log_logits = extractor_mlp_forward(params, emb, edge_index, batch,
                                           num_graphs, learn_edge_att=True,
                                           tile_e=128)                # 4 tiles, 2-way core split
    jax.block_until_ready(att_log_logits)
    assert att_log_logits.shape == (E, 1)
    assert bool(jnp.all(jnp.isfinite(att_log_logits)))
    print("KERNEL_OK")
</pallas_src>

<mosaic_0001>
module attributes {stable_mosaic.version = 11 : i64} {
  func.func @_stats1_kernel(%arg0: i32, %arg1: i32, %arg2: memref<128x128xbf16, #tpu.memory_space<vmem>>, %arg3: memref<128x1xi32, #tpu.memory_space<vmem>>, %arg4: memref<128x256xbf16, #tpu.memory_space<vmem>>, %arg5: memref<1x256xf32, #tpu.memory_space<vmem>>, %arg6: memref<1x8x256xf32, #tpu.memory_space<vmem>>, %arg7: memref<1x8x256xf32, #tpu.memory_space<vmem>>, %arg8: memref<1x8x128xf32, #tpu.memory_space<vmem>>) attributes {dimension_semantics = [#tpu.dimension_semantics<parallel>, #tpu.dimension_semantics<arbitrary>], iteration_bounds = array<i64: 2, 2>, scalar_prefetch = 0 : i64, scratch_operands = 0 : i64, tpu.core_type = #tpu.core_type<tc>, window_params = [{transform_indices = @transform_0, window_bounds = array<i64: 128, 128>}, {transform_indices = @transform_1, window_bounds = array<i64: 128, 1>}, {pipeline_mode = #tpu.pipeline_mode<synchronous>, transform_indices = @transform_2, window_bounds = array<i64: 128, 256>}, {pipeline_mode = #tpu.pipeline_mode<synchronous>, transform_indices = @transform_3, window_bounds = array<i64: 1, 256>}, {transform_indices = @transform_4, window_bounds = array<i64: 1, 8, 256>}, {transform_indices = @transform_5, window_bounds = array<i64: 1, 8, 256>}, {transform_indices = @transform_6, window_bounds = array<i64: 1, 8, 128>}]} {
    %c0_i32 = arith.constant 0 : i32
    %0 = arith.cmpi eq, %arg1, %c0_i32 : i32
    %1 = arith.extui %0 : i1 to i32
    %c0_i32_0 = arith.constant 0 : i32
    %2 = arith.cmpi ne, %1, %c0_i32_0 : i32
    scf.if %2 {
      %cst_29 = arith.constant 0.000000e+00 : f32
      %32 = vector.broadcast %cst_29 : f32 to vector<1x8x256xf32>
      %c0_30 = arith.constant 0 : index
      %c0_31 = arith.constant 0 : index
      %c0_32 = arith.constant 0 : index
      %33 = vector.load %arg6[%c0_30, %c0_31, %c0_32] : memref<1x8x256xf32, #tpu.memory_space<vmem>>, vector<1x8x256xf32>
      tpu.vector_store %arg6[%c0_30, %c0_31, %c0_32], %32 {strides = array<i32>} : memref<1x8x256xf32, #tpu.memory_space<vmem>>, vector<1x8x256xf32>,
      %cst_33 = arith.constant 0.000000e+00 : f32
      %34 = vector.broadcast %cst_33 : f32 to vector<1x8x256xf32>
      %c0_34 = arith.constant 0 : index
      %c0_35 = arith.constant 0 : index
      %c0_36 = arith.constant 0 : index
      %35 = vector.load %arg7[%c0_34, %c0_35, %c0_36] : memref<1x8x256xf32, #tpu.memory_space<vmem>>, vector<1x8x256xf32>
      tpu.vector_store %arg7[%c0_34, %c0_35, %c0_36], %34 {strides = array<i32>} : memref<1x8x256xf32, #tpu.memory_space<vmem>>, vector<1x8x256xf32>,
      %cst_37 = arith.constant 0.000000e+00 : f32
      %36 = vector.broadcast %cst_37 : f32 to vector<1x8x128xf32>
      %c0_38 = arith.constant 0 : index
      %c0_39 = arith.constant 0 : index
      %c0_40 = arith.constant 0 : index
      %37 = vector.load %arg8[%c0_38, %c0_39, %c0_40] : memref<1x8x128xf32, #tpu.memory_space<vmem>>, vector<1x8x128xf32>
      tpu.vector_store %arg8[%c0_38, %c0_39, %c0_40], %36 {strides = array<i32>} : memref<1x8x128xf32, #tpu.memory_space<vmem>>, vector<1x8x128xf32>,
    } else {
    }
    %c0 = arith.constant 0 : index
    %c0_1 = arith.constant 0 : index
    %3 = vector.load %arg2[%c0, %c0_1] : memref<128x128xbf16, #tpu.memory_space<vmem>>, vector<128x128xbf16>
    %c0_2 = arith.constant 0 : index
    %c0_3 = arith.constant 0 : index
    %4 = vector.load %arg4[%c0_2, %c0_3] : memref<128x256xbf16, #tpu.memory_space<vmem>>, vector<128x256xbf16>
    %cst = arith.constant dense<0.000000e+00> : vector<128x256xf32>
    %5 = tpu.matmul %3, %4, %cst {dimension_numbers = #tpu.dot_dimension_numbers<[1], [0], [0], [1], [0, 0, 1, 1], [], []>} : vector<128x128xbf16>, vector<128x256xbf16>, vector<128x256xf32> -> vector<128x256xf32>
    %c0_4 = arith.constant 0 : index
    %c0_5 = arith.constant 0 : index
    %6 = vector.load %arg5[%c0_4, %c0_5] : memref<1x256xf32, #tpu.memory_space<vmem>>, vector<1x256xf32>
    %7 = vector.broadcast %6 : vector<1x256xf32> to vector<128x256xf32>
    %8 = arith.addf %5, %7 : vector<128x256xf32>
    %c0_6 = arith.constant 0 : index
    %c0_7 = arith.constant 0 : index
    %9 = vector.load %arg3[%c0_6, %c0_7] : memref<128x1xi32, #tpu.memory_space<vmem>>, vector<128x1xi32>
    %10 = tpu.iota {dimensions = array<i32: 1>} : vector<128x8xi32>
    %11 = vector.broadcast %9 : vector<128x1xi32> to vector<128x8xi32>
    %12 = arith.cmpi eq, %10, %11 : vector<128x8xi32>
    %13 = arith.extui %12 : vector<128x8xi1> to vector<128x8xi32>
    %14 = arith.sitofp %13 : vector<128x8xi32> to vector<128x8xf32>
    %c0_8 = arith.constant 0 : index
    %c0_9 = arith.constant 0 : index
    %c0_10 = arith.constant 0 : index
    %15 = vector.load %arg6[%c0_8, %c0_9, %c0_10] : memref<1x8x256xf32, #tpu.memory_space<vmem>>, vector<1x8x256xf32>
    %cst_11 = arith.constant dense<0.000000e+00> : vector<8x256xf32>
    %16 = tpu.matmul %14, %8, %cst_11 {dimension_numbers = #tpu.dot_dimension_numbers<[0], [0], [1], [1], [0, 1, 1, 1], [], []>} : vector<128x8xf32>, vector<128x256xf32>, vector<8x256xf32> -> vector<8x256xf32>
    %17 = vector.shape_cast %16 : vector<8x256xf32> to vector<1x8x256xf32>
    %18 = arith.addf %15, %17 : vector<1x8x256xf32>
    %c0_12 = arith.constant 0 : index
    %c0_13 = arith.constant 0 : index
    %c0_14 = arith.constant 0 : index
    %19 = vector.load %arg6[%c0_12, %c0_13, %c0_14] : memref<1x8x256xf32, #tpu.memory_space<vmem>>, vector<1x8x256xf32>
    tpu.vector_store %arg6[%c0_12, %c0_13, %c0_14], %18 {strides = array<i32>} : memref<1x8x256xf32, #tpu.memory_space<vmem>>, vector<1x8x256xf32>,
    %c0_15 = arith.constant 0 : index
    %c0_16 = arith.constant 0 : index
    %c0_17 = arith.constant 0 : index
    %20 = vector.load %arg7[%c0_15, %c0_16, %c0_17] : memref<1x8x256xf32, #tpu.memory_space<vmem>>, vector<1x8x256xf32>
    %21 = arith.mulf %8, %8 : vector<128x256xf32>
    %cst_18 = arith.constant dense<0.000000e+00> : vector<8x256xf32>
    %22 = tpu.matmul %14, %21, %cst_18 {dimension_numbers = #tpu.dot_dimension_numbers<[0], [0], [1], [1], [0, 1, 1, 1], [], []>} : vector<128x8xf32>, vector<128x256xf32>, vector<8x256xf32> -> vector<8x256xf32>
    %23 = vector.shape_cast %22 : vector<8x256xf32> to vector<1x8x256xf32>
    %24 = arith.addf %20, %23 : vector<1x8x256xf32>
    %c0_19 = arith.constant 0 : index
    %c0_20 = arith.constant 0 : index
    %c0_21 = arith.constant 0 : index
    %25 = vector.load %arg7[%c0_19, %c0_20, %c0_21] : memref<1x8x256xf32, #tpu.memory_space<vmem>>, vector<1x8x256xf32>
    tpu.vector_store %arg7[%c0_19, %c0_20, %c0_21], %24 {strides = array<i32>} : memref<1x8x256xf32, #tpu.memory_space<vmem>>, vector<1x8x256xf32>,
    %c0_22 = arith.constant 0 : index
    %c0_23 = arith.constant 0 : index
    %c0_24 = arith.constant 0 : index
    %26 = vector.load %arg8[%c0_22, %c0_23, %c0_24] : memref<1x8x128xf32, #tpu.memory_space<vmem>>, vector<1x8x128xf32>
    %cst_25 = arith.constant dense<0.000000e+00> : vector<8xf32>
    %27 = vector.multi_reduction <add>, %14, %cst_25 [0] : vector<128x8xf32> to vector<8xf32>
    %28 = vector.shape_cast %27 : vector<8xf32> to vector<1x8x1xf32>
    %29 = vector.broadcast %28 : vector<1x8x1xf32> to vector<1x8x128xf32>
    %30 = arith.addf %26, %29 : vector<1x8x128xf32>
    %c0_26 = arith.constant 0 : index
    %c0_27 = arith.constant 0 : index
    %c0_28 = arith.constant 0 : index
    %31 = vector.load %arg8[%c0_26, %c0_27, %c0_28] : memref<1x8x128xf32, #tpu.memory_space<vmem>>, vector<1x8x128xf32>
    tpu.vector_store %arg8[%c0_26, %c0_27, %c0_28], %30 {strides = array<i32>} : memref<1x8x128xf32, #tpu.memory_space<vmem>>, vector<1x8x128xf32>,
    return
  }
  func.func @transform_0(%arg0: i32, %arg1: i32) -> (i32, i32) {
    %c2_i32 = arith.constant 2 : i32
    %0 = arith.muli %arg0, %c2_i32 : i32
    %1 = arith.addi %0, %arg1 : i32
    %c0_i32 = arith.constant 0 : i32
    %c0_i32_0 = arith.constant 0 : i32
    return %1, %c0_i32 : i32, i32
  }
  func.func @transform_1(%arg0: i32, %arg1: i32) -> (i32, i32) {
    %c2_i32 = arith.constant 2 : i32
    %0 = arith.muli %arg0, %c2_i32 : i32
    %1 = arith.addi %0, %arg1 : i32
    %c0_i32 = arith.constant 0 : i32
    %c0_i32_0 = arith.constant 0 : i32
    return %1, %c0_i32 : i32, i32
  }
  func.func @transform_2(%arg0: i32, %arg1: i32) -> (i32, i32) {
    %c0_i32 = arith.constant 0 : i32
    %c0_i32_0 = arith.constant 0 : i32
    %c0_i32_1 = arith.constant 0 : i32
    return %c0_i32, %c0_i32_0 : i32, i32
  }
  func.func @transform_3(%arg0: i32, %arg1: i32) -> (i32, i32) {
    %c0_i32 = arith.constant 0 : i32
    %c0_i32_0 = arith.constant 0 : i32
    %c0_i32_1 = arith.constant 0 : i32
    return %c0_i32, %c0_i32_0 : i32, i32
  }
  func.func @transform_4(%arg0: i32, %arg1: i32) -> (i32, i32, i32) {
    %c0_i32 = arith.constant 0 : i32
    %c0_i32_0 = arith.constant 0 : i32
    %c0_i32_1 = arith.constant 0 : i32
    return %arg0, %c0_i32, %c0_i32_0 : i32, i32, i32
  }
  func.func @transform_5(%arg0: i32, %arg1: i32) -> (i32, i32, i32) {
    %c0_i32 = arith.constant 0 : i32
    %c0_i32_0 = arith.constant 0 : i32
    %c0_i32_1 = arith.constant 0 : i32
    return %arg0, %c0_i32, %c0_i32_0 : i32, i32, i32
  }
  func.func @transform_6(%arg0: i32, %arg1: i32) -> (i32, i32, i32) {
    %c0_i32 = arith.constant 0 : i32
    %c0_i32_0 = arith.constant 0 : i32
    %c0_i32_1 = arith.constant 0 : i32
    return %arg0, %c0_i32, %c0_i32_0 : i32, i32, i32
  }
}

</mosaic_0001>

<llo_original>
// kernel: tpu_custom_call.1
$region0: #{tpu_custom_call.1}
  #allocation0 [shape = 'u32[]', space=smem, size = 0x4, offset = 0x4, fixed_abs, tag = 'smem constant byte address 0x4 - core index']
  #allocation1 [shape = 'u32[144,128]{1,0:T(1,128)}', space=vmem, size = 0x12000, scoped, tag = 'internal scratch']
  %s0 = inlined_call_operand.vmem [shape: bf16[512,128], index: 0, kind: input, shape index: {}]
  %s1 = inlined_call_operand.vmem [shape: s32[512,1], index: 1, kind: input, shape index: {}]
  %s2 = inlined_call_operand.vmem [shape: bf16[128,256], index: 2, kind: input, shape index: {}]
  %s3 = inlined_call_operand.vmem [shape: f32[1,256], index: 3, kind: input, shape index: {}]
  %s4 = inlined_call_operand.hbm [shape: f32[2,8,256], index: 4, kind: output, shape index: {0}]
  %s5 = inlined_call_operand.hbm [shape: f32[2,8,256], index: 5, kind: output, shape index: {1}]
  %s6 = inlined_call_operand.hbm [shape: f32[2,8,128], index: 6, kind: output, shape index: {2}]
  %7 = xla_tuple %s4, %s5, %s6
  %s8 = sld [smem:[#allocation0]]
  $region69: #{tpu_custom_call.1} parent=0
    _
  %s10 = ssub.s32 1, %s8
  %s11 = scalar_select 0, %s10, %s8
  $region1: #{tpu_custom_call.1} parent=0
    #allocation2 [shape = 'u8[16384]{0}', space=vmem, size = 0x4000, scoped, tag = 'output window, operand 0']
    #allocation3 [shape = 's32[2]{0}', space=sflag, size = 0x8, scoped, tag = 'scoped memory for tpu_custom_call.1']
    #allocation4 [shape = 'u8[16384]{0}', space=vmem, size = 0x4000, scoped, tag = 'output window, operand 1']
    #allocation5 [shape = 's32[2]{0}', space=sflag, size = 0x8, scoped, tag = 'scoped memory for tpu_custom_call.1']
    #allocation6 [shape = 'u8[8192]{0}', space=vmem, size = 0x2000, scoped, tag = 'output window, operand 2']
    %12 = vsyncpa [#allocation3], 0
    %s13 = scalar_lea.sflag [#allocation3], 1
    %14 = vsyncpa %s13, 0
    %15 = vsyncpa [#allocation5], 0
    %s16 = scalar_lea.sflag [#allocation5], 1
    %17 = vsyncpa %s16, 0
    loop: start=0, step=1, limit=6
    $region2: #{tpu_custom_call.1} parent=1 // loop_pre_header
      _
    $region3: #{tpu_custom_call.1} parent=1 // loop_header
      %s19 = sphi 0, %s23
      %p20 = scmp.ge.s32.totalorder %s19, 6
      %s26 = sphi 0, %s38
      %s27 = sphi 0, %s34
      %s28 = sphi 0, %s26
      %s29 = sphi 0, %s27
      %s30 = sphi 0, %s28
      %s31 = sphi 0, %s29
      %s45 = sphi 0, %s47
      %s48 = sphi 0, %s45
      %s49 = sphi 0, %s48
      %s65 = sphi 0, %s49
      %s75 = sphi 0, %s77
      %s78 = sphi 0, %s75
      %s79 = sphi 0, %s78
      %s95 = sphi 0, %s79
      %s99 = sphi 0, %s99
      %s101 = sphi 0, %s99
      %s102 = sphi 0, %s101
      %s116 = sphi 0, %s102
      %s120 = sphi 0, %s120
      %s122 = sphi 0, %s120
      %s123 = sphi 0, %s122
      %s137 = sphi 0, %s123
      %s143 = sphi 0, %s145
      %s146 = sphi 0, %s143
      %s147 = sphi 0, %s146
      %s163 = sphi 0, %s147
      %s169 = sphi 0, %s171
      %s172 = sphi 0, %s169
      %s173 = sphi 0, %s172
      %s189 = sphi 0, %s173
      %s195 = sphi 0, %s197
      %s198 = sphi 0, %s195
      %s199 = sphi 0, %s198
      %s215 = sphi 0, %s199
    $region4: #{tpu_custom_call.1} parent=1 // loop_header_branch
      %22 = sbr.rel (%p20) target = $region8
    $region5: #{tpu_custom_call.1} parent=1 // loop_body
      %s24 = ssub.s32 %s19, 1
      %s25 = ssub.s32 %s19, 2
      %s32 = sadd.s32 1, %s27
      %p33 = scmp.ge.s32.totalorder %s32, 2
      %s34 = scalar_select %p33, 0, %s32
      %s35 = sadd.s32 1, %s26
      %s36 = scalar_select %p33, %s35, %s26
      %p37 = scmp.ge.s32.totalorder %s36, 2
      %s38 = scalar_select %p37, 0, %s36
      %s39 = smul.u32 %s26, 2
      %s40 = sadd.s32 %s39, %s27
      %s41 = smul.u32 %s38, 2
      %s42 = sadd.s32 %s41, %s34
      %s43 = ssub.s32 %s40, %s42
      %p44 = scmp.eq.s32.totalorder %s43, 0
      %s46 = sadd.s32 %s45, 1
      %s47 = scalar_select %p44, %s45, %s46
      %p50 = pneg %p44
      %p51 = scmp.eq.s32.totalorder %s19, 3
      %p52 = por %p50, %p51
      %p53 = scmp.ne.s32.totalorder %s45, %s48
      %p54 = scmp.eq.s32.totalorder %s19, 0
      %p55 = por %p53, %p54
      %p56 = scmp.ne.s32.totalorder %s45, %s48
      %p57 = scmp.eq.s32.totalorder %s24, 3
      %p58 = por %p56, %p57
      %p59 = scmp.ne.s32.totalorder %s48, %s49
      %p60 = scmp.eq.s32.totalorder %s24, 0
      %p61 = por %p59, %p60
      %p62 = scmp.ne.s32.totalorder %s48, %s49
      %p63 = scmp.eq.s32.totalorder %s25, 3
      %p64 = por %p62, %p63
      %p66 = scmp.ne.s32.totalorder %s49, %s65
      %p67 = scmp.eq.s32.totalorder %s25, 0
      %p68 = por %p66, %p67
      %s69 = smul.u32 %s26, 2
      %s70 = sadd.s32 %s69, %s27
      %s71 = smul.u32 %s38, 2
      %s72 = sadd.s32 %s71, %s34
      %s73 = ssub.s32 %s70, %s72
      %p74 = scmp.eq.s32.totalorder %s73, 0
      %s76 = sadd.s32 %s75, 1
      %s77 = scalar_select %p74, %s75, %s76
      %p80 = pneg %p74
      %p81 = scmp.eq.s32.totalorder %s19, 3
      %p82 = por %p80, %p81
      %p83 = scmp.ne.s32.totalorder %s75, %s78
      %p84 = scmp.eq.s32.totalorder %s19, 0
      %p85 = por %p83, %p84
      %p86 = scmp.ne.s32.totalorder %s75, %s78
      %p87 = scmp.eq.s32.totalorder %s24, 3
      %p88 = por %p86, %p87
      %p89 = scmp.ne.s32.totalorder %s78, %s79
      %p90 = scmp.eq.s32.totalorder %s24, 0
      %p91 = por %p89, %p90
      %p92 = scmp.ne.s32.totalorder %s78, %s79
      %p93 = scmp.eq.s32.totalorder %s25, 3
      %p94 = por %p92, %p93
      %p96 = scmp.ne.s32.totalorder %s79, %s95
      %p97 = scmp.eq.s32.totalorder %s25, 0
      %p98 = por %p96, %p97
      %s100 = sadd.s32 %s99, 1
      %p103 = scmp.eq.s32.totalorder %s19, 3
      %p104 = scmp.ne.s32.totalorder %s99, %s101
      %p105 = scmp.eq.s32.totalorder %s19, 0
      %p106 = por %p104, %p105
      %p107 = scmp.ne.s32.totalorder %s99, %s101
      %p108 = scmp.eq.s32.totalorder %s24, 3
      %p109 = por %p107, %p108
      %p110 = scmp.ne.s32.totalorder %s101, %s102
      %p111 = scmp.eq.s32.totalorder %s24, 0
      %p112 = por %p110, %p111
      %p113 = scmp.ne.s32.totalorder %s101, %s102
      %p114 = scmp.eq.s32.totalorder %s25, 3
      %p115 = por %p113, %p114
      %p117 = scmp.ne.s32.totalorder %s102, %s116
      %p118 = scmp.eq.s32.totalorder %s25, 0
      %p119 = por %p117, %p118
      %s121 = sadd.s32 %s120, 1
      %p124 = scmp.eq.s32.totalorder %s19, 3
      %p125 = scmp.ne.s32.totalorder %s120, %s122
      %p126 = scmp.eq.s32.totalorder %s19, 0
      %p127 = por %p125, %p126
      %p128 = scmp.ne.s32.totalorder %s120, %s122
      %p129 = scmp.eq.s32.totalorder %s24, 3
      %p130 = por %p128, %p129
      %p131 = scmp.ne.s32.totalorder %s122, %s123
      %p132 = scmp.eq.s32.totalorder %s24, 0
      %p133 = por %p131, %p132
      %p134 = scmp.ne.s32.totalorder %s122, %s123
      %p135 = scmp.eq.s32.totalorder %s25, 3
      %p136 = por %p134, %p135
      %p138 = scmp.ne.s32.totalorder %s123, %s137
      %p139 = scmp.eq.s32.totalorder %s25, 0
      %p140 = por %p138, %p139
      %s141 = ssub.s32 %s26, %s38
      %p142 = scmp.eq.s32.totalorder %s141, 0
      %s144 = sadd.s32 %s143, 1
      %s145 = scalar_select %p142, %s143, %s144
      %p148 = pneg %p142
      %p149 = scmp.eq.s32.totalorder %s19, 3
      %p150 = por %p148, %p149
      %p151 = scmp.ne.s32.totalorder %s143, %s146
      %p152 = scmp.eq.s32.totalorder %s19, 0
      %p153 = por %p151, %p152
      %p154 = scmp.ne.s32.totalorder %s143, %s146
      %p155 = scmp.eq.s32.totalorder %s24, 3
      %p156 = por %p154, %p155
      %p157 = scmp.ne.s32.totalorder %s146, %s147
      %p158 = scmp.eq.s32.totalorder %s24, 0
      %p159 = por %p157, %p158
      %p160 = scmp.ne.s32.totalorder %s146, %s147
      %p161 = scmp.eq.s32.totalorder %s25, 3
      %p162 = por %p160, %p161
      %p164 = scmp.ne.s32.totalorder %s147, %s163
      %p165 = scmp.eq.s32.totalorder %s25, 0
      %p166 = por %p164, %p165
      %s167 = ssub.s32 %s26, %s38
      %p168 = scmp.eq.s32.totalorder %s167, 0
      %s170 = sadd.s32 %s169, 1
      %s171 = scalar_select %p168, %s169, %s170
      %p174 = pneg %p168
      %p175 = scmp.eq.s32.totalorder %s19, 3
      %p176 = por %p174, %p175
      %p177 = scmp.ne.s32.totalorder %s169, %s172
      %p178 = scmp.eq.s32.totalorder %s19, 0
      %p179 = por %p177, %p178
      %p180 = scmp.ne.s32.totalorder %s169, %s172
      %p181 = scmp.eq.s32.totalorder %s24, 3
      %p182 = por %p180, %p181
      %p183 = scmp.ne.s32.totalorder %s172, %s173
      %p184 = scmp.eq.s32.totalorder %s24, 0
      %p185 = por %p183, %p184
      %p186 = scmp.ne.s32.totalorder %s172, %s173
      %p187 = scmp.eq.s32.totalorder %s25, 3
      %p188 = por %p186, %p187
      %p190 = scmp.ne.s32.totalorder %s173, %s189
      %p191 = scmp.eq.s32.totalorder %s25, 0
      %p192 = por %p190, %p191
      %s193 = ssub.s32 %s26, %s38
      %p194 = scmp.eq.s32.totalorder %s193, 0
      %s196 = sadd.s32 %s195, 1
      %s197 = scalar_select %p194, %s195, %s196
      %p200 = pneg %p194
      %p201 = scmp.eq.s32.totalorder %s19, 3
      %p202 = por %p200, %p201
      %p203 = scmp.ne.s32.totalorder %s195, %s198
      %p204 = scmp.eq.s32.totalorder %s19, 0
      %p205 = por %p203, %p204
      %p206 = scmp.ne.s32.totalorder %s195, %s198
      %p207 = scmp.eq.s32.totalorder %s24, 3
      %p208 = por %p206, %p207
      %p209 = scmp.ne.s32.totalorder %s198, %s199
      %p210 = scmp.eq.s32.totalorder %s24, 0
      %p211 = por %p209, %p210
      %p212 = scmp.ne.s32.totalorder %s198, %s199
      %p213 = scmp.eq.s32.totalorder %s25, 3
      %p214 = por %p212, %p213
      %p216 = scmp.ne.s32.totalorder %s199, %s215
      %p217 = scmp.eq.s32.totalorder %s25, 0
      %p218 = por %p216, %p217
      %p219 = scmp.le.s32.totalorder 1, %s19
      %p220 = scmp.lt.s32.totalorder %s19, 5
      %p221 = pnand %p219, %p220
      %p222 = pneg %p221
      // Predicated region
      $region9: #{tpu_custom_call.1} parent=5 // pred_check
        _
      $region10: #{tpu_custom_call.1} parent=5 // pred_check_branch
        %224 = sbr.rel (%p221) target = $region12
      $region11: #{tpu_custom_call.1} parent=5 // pred_region
        %s225 = ssub.s32 %s19, 1
        // Predicated region
        $region13: #{tpu_custom_call.1} parent=11 // pred_check
          %p226 = pneg %p112
        $region14: #{tpu_custom_call.1} parent=11 // pred_check_branch
          %228 = sbr.rel (%p226) target = $region16
        $region15: #{tpu_custom_call.1} parent=11 // pred_region
          _
        $region16: #{tpu_custom_call.1} parent=11 // pred_fallthru
          _
        // Predicated region
        $region17: #{tpu_custom_call.1} parent=11 // pred_check
          %p229 = pneg %p133
        $region18: #{tpu_custom_call.1} parent=11 // pred_check_branch
          %231 = sbr.rel (%p229) target = $region20
        $region19: #{tpu_custom_call.1} parent=11 // pred_region
          _
        $region20: #{tpu_custom_call.1} parent=11 // pred_fallthru
          _
      $region12: #{tpu_custom_call.1} parent=5 // pred_fallthru
        _
      %p232 = scmp.lt.s32.totalorder %s19, 4
      // Predicated region
      $region21: #{tpu_custom_call.1} parent=5 // pred_check
        %p233 = pneg %p232
      $region22: #{tpu_custom_call.1} parent=5 // pred_check_branch
        %235 = sbr.rel (%p233) target = $region24
      $region23: #{tpu_custom_call.1} parent=5 // pred_region
        // Predicated region
        $region25: #{tpu_custom_call.1} parent=23 // pred_check
          %p236 = pneg %p55
        $region26: #{tpu_custom_call.1} parent=23 // pred_check_branch
          %238 = sbr.rel (%p236) target = $region28
        $region27: #{tpu_custom_call.1} parent=23 // pred_region
          %s239 = smul.u32 %s26, 2
          %s240 = sadd.s32 %s239, %s27
          %s241 = smul.u32 16, %s240
          %p242 = scmp.lt.s32.totalorder %s241, 63
          %s243 = scalar_select %p242, %s241, 63
          %s244 = smul.addr %s243, 4
          %s245 = scalar_lea.vmem %s0, %s244
          %s246 = smul.u32 %s26, 2
          %s247 = sadd.s32 %s246, %s27
          %s248 = smul.u32 16, %s247
        $region28: #{tpu_custom_call.1} parent=23 // pred_fallthru
          _
        // Predicated region
        $region29: #{tpu_custom_call.1} parent=23 // pred_check
          %p249 = pneg %p85
        $region30: #{tpu_custom_call.1} parent=23 // pred_check_branch
          %251 = sbr.rel (%p249) target = $region32
        $region31: #{tpu_custom_call.1} parent=23 // pred_region
          %s252 = smul.u32 %s26, 2
          %s253 = sadd.s32 %s252, %s27
          %s254 = smul.u32 16, %s253
          %p255 = scmp.lt.s32.totalorder %s254, 63
          %s256 = scalar_select %p255, %s254, 63
          %s257 = smul.addr %s256, 8
          %s258 = scalar_lea.vmem %s1, %s257
          %s259 = smul.u32 %s26, 2
          %s260 = sadd.s32 %s259, %s27
          %s261 = smul.u32 16, %s260
        $region32: #{tpu_custom_call.1} parent=23 // pred_fallthru
          _
      $region24: #{tpu_custom_call.1} parent=5 // pred_fallthru
        _
      %p262 = scmp.le.s32.totalorder 1, %s19
      %p263 = scmp.lt.s32.totalorder %s19, 5
      %p264 = pnand %p262, %p263
      %p265 = pneg %p264
      // Predicated region
      $region33: #{tpu_custom_call.1} parent=5 // pred_check
        _
      $region34: #{tpu_custom_call.1} parent=5 // pred_check_branch
        %267 = sbr.rel (%p264) target = $region36
      $region35: #{tpu_custom_call.1} parent=5 // pred_region
        %s268 = ssub.s32 %s19, 1
        %s269 = smul.u32 %s28, 2
        %s270 = sadd.s32 %s269, %s29
        %s271 = smul.u32 16, %s270
        %p272 = scmp.lt.s32.totalorder %s271, 63
        %s273 = scalar_select %p272, %s271, 63
        %s274 = smul.addr %s273, 4
        %s275 = scalar_lea.vmem %s0, %s274
        %p276 = pneg %p61
        %p277 = pneg %p58
        %s278 = smul.u32 %s28, 2
        %s279 = sadd.s32 %s278, %s29
        %s280 = smul.u32 16, %s279
        %p281 = scmp.lt.s32.totalorder %s280, 63
        %s282 = scalar_select %p281, %s280, 63
        %s283 = smul.addr %s282, 8
        %s284 = scalar_lea.vmem %s1, %s283
        %p285 = pneg %p91
        %p286 = pneg %p88
        %p287 = pneg %p112
        %p288 = pneg %p109
        %p289 = pneg %p133
        %p290 = pneg %p130
        %p291 = pneg %p159
        %p292 = pneg %p156
        %s293 = sand.u32 %s146, 1
        %s294 = scalar_lea.sflag [#allocation3], %s293
        %s295 = sand.u32 %s146, 1
        %s296 = smul.addr %s295, 16
        %s297 = scalar_lea.vmem [#allocation2], %s296
        %p298 = pneg %p185
        %p299 = pneg %p182
        %s300 = sand.u32 %s24, 1
        %s301 = scalar_lea.sflag [#allocation5], %s300
        %s302 = sand.u32 %s172, 1
        %s303 = smul.addr %s302, 16
        %s304 = scalar_lea.vmem [#allocation4], %s303
        %p305 = pneg %p211
        %p306 = pneg %p208
        %s307 = sand.u32 %s24, 1
        %s308 = scalar_lea.sflag [#allocation5], %s307
        %s309 = sand.u32 %s198, 1
        %s310 = smul.addr %s309, 8
        %s311 = scalar_lea.vmem [#allocation6], %s310
        %s312 = smul.u32 %s28, 2
        %s313 = sadd.s32 %s312, %s29
        %s314 = smul.u32 16, %s313
        %p315 = scmp.lt.s32.totalorder %s314, 63
        %s316 = scalar_select %p315, %s314, 63
        %s317 = smul.addr %s316, 4
        %s318 = scalar_lea.vmem %s0, %s317
        %s319 = smul.u32 %s28, 2
        %s320 = sadd.s32 %s319, %s29
        %s321 = smul.u32 16, %s320
        %s322 = smul.u32 %s28, 2
        %s323 = sadd.s32 %s322, %s29
        %s324 = smul.u32 16, %s323
        %p325 = scmp.lt.s32.totalorder %s324, 63
        %s326 = scalar_select %p325, %s324, 63
        %s327 = smul.addr %s326, 8
        %s328 = scalar_lea.vmem %s1, %s327
        %s329 = smul.u32 %s28, 2
        %s330 = sadd.s32 %s329, %s29
        %s331 = smul.u32 16, %s330
        %p333 = scmp.eq.s32.totalorder %s29, 0
        // Predicated region
        $region37: #{tpu_custom_call.1} parent=35 // pred_check
          %p334 = pneg %p333
        $region38: #{tpu_custom_call.1} parent=35 // pred_check_branch
          %336 = sbr.rel (%p334) target = $region40
        $region39: #{tpu_custom_call.1} parent=35 // pred_region
          %337 = vst [vmem:[%s297] sm:$0xff] 0.0
          %338 = vst [vmem:[%s297 + $0x8] sm:$0xff] 0.0
          %339 = vst [vmem:[%s304] sm:$0xff] 0.0
          %340 = vst [vmem:[%s304 + $0x8] sm:$0xff] 0.0
          %341 = vst [vmem:[%s311] sm:$0xff] 0.0
        $region40: #{tpu_custom_call.1} parent=35 // pred_fallthru
          _
        %v342 = vld [vmem:[%s318] sm:$0xf]
        %v343 = vld [vmem:[%s318 + $0x4] sm:$0xf]
        %v344 = vld [vmem:[%s318 + $0x8] sm:$0xf]
        %v345 = vld [vmem:[%s318 + $0xc] sm:$0xf]
        %v346 = vld [vmem:[%s318 + $0x10] sm:$0xf]
        %v347 = vld [vmem:[%s318 + $0x14] sm:$0xf]
        %v348 = vld [vmem:[%s318 + $0x18] sm:$0xf]
        %v349 = vld [vmem:[%s318 + $0x1c] sm:$0xf]
        %v350 = vld [vmem:[%s318 + $0x20] sm:$0xf]
        %v351 = vld [vmem:[%s318 + $0x24] sm:$0xf]
        %v352 = vld [vmem:[%s318 + $0x28] sm:$0xf]
        %v353 = vld [vmem:[%s318 + $0x2c] sm:$0xf]
        %v354 = vld [vmem:[%s318 + $0x30] sm:$0xf]
        %v355 = vld [vmem:[%s318 + $0x34] sm:$0xf]
        %v356 = vld [vmem:[%s318 + $0x38] sm:$0xf]
        %v357 = vld [vmem:[%s318 + $0x3c] sm:$0xf]
        %v358 = vld [vmem:[%s2] sm:$0xff]
        %v359 = vld [vmem:[%s2 + $0x8] sm:$0xff]
        %v360 = vld [vmem:[%s2 + $0x10] sm:$0xff]
        %v361 = vld [vmem:[%s2 + $0x18] sm:$0xff]
        %v362 = vld [vmem:[%s2 + $0x20] sm:$0xff]
        %v363 = vld [vmem:[%s2 + $0x28] sm:$0xff]
        %v364 = vld [vmem:[%s2 + $0x30] sm:$0xff]
        %v365 = vld [vmem:[%s2 + $0x38] sm:$0xff]
        %v366 = vld [vmem:[%s2 + $0x40] sm:$0xff]
        %v367 = vld [vmem:[%s2 + $0x48] sm:$0xff]
        %v368 = vld [vmem:[%s2 + $0x50] sm:$0xff]
        %v369 = vld [vmem:[%s2 + $0x58] sm:$0xff]
        %v370 = vld [vmem:[%s2 + $0x60] sm:$0xff]
        %v371 = vld [vmem:[%s2 + $0x68] sm:$0xff]
        %v372 = vld [vmem:[%s2 + $0x70] sm:$0xff]
        %v373 = vld [vmem:[%s2 + $0x78] sm:$0xff]
        %v374 = vld [vmem:[%s3] sm:$0x3]
        %v376 = vlaneseq
        %v377 = vshrl.u32 %v376, 7
        %v378 = vsub.s32 0, %v377
        %v379 = vrot.slane %v374, %v378
        %v380 = vlaneseq
        %v381 = vshrl.u32 %v380, 7
        %v382 = vsub.s32 1, %v381
        %v383 = vrot.slane %v374, %v382
        %v402 = vunpack.c.l.b16 %v342
        %v403 = vunpack.c.l.b16 %v343
        %v404 = vunpack.c.l.b16 %v344
        %v405 = vunpack.c.l.b16 %v345
        %v406 = vunpack.c.l.b16 %v346
        %v407 = vunpack.c.l.b16 %v347
        %v408 = vunpack.c.l.b16 %v348
        %v409 = vunpack.c.l.b16 %v349
        %v410 = vunpack.c.l.b16 %v350
        %v411 = vunpack.c.l.b16 %v351
        %v412 = vunpack.c.l.b16 %v352
        %v413 = vunpack.c.l.b16 %v353
        %v414 = vunpack.c.l.b16 %v354
        %v415 = vunpack.c.l.b16 %v355
        %v416 = vunpack.c.l.b16 %v356
        %v417 = vunpack.c.l.b16 %v357
        %v418 = vpack.c.b16 %v403, %v402
        %v419 = vpack.c.b16 %v405, %v404
        %v420 = vpack.c.b16 %v407, %v406
        %v421 = vpack.c.b16 %v409, %v408
        %v422 = vpack.c.b16 %v411, %v410
        %v423 = vpack.c.b16 %v413, %v412
        %v424 = vpack.c.b16 %v415, %v414
        %v425 = vpack.c.b16 %v417, %v416
        %v450 = vunpack.c.l.b16 %v358
        %v451 = vunpack.c.h.b16 %v358
        %v452 = vunpack.c.l.b16 %v359
        %v453 = vunpack.c.h.b16 %v359
        %v454 = vunpack.c.l.b16 %v360
        %v455 = vunpack.c.h.b16 %v360
        %v456 = vunpack.c.l.b16 %v361
        %v457 = vunpack.c.h.b16 %v361
        %v458 = vunpack.c.l.b16 %v362
        %v459 = vunpack.c.h.b16 %v362
        %v460 = vunpack.c.l.b16 %v363
        %v461 = vunpack.c.h.b16 %v363
        %v462 = vunpack.c.l.b16 %v364
        %v463 = vunpack.c.h.b16 %v364
        %v464 = vunpack.c.l.b16 %v365
        %v465 = vunpack.c.h.b16 %v365
        %v466 = vunpack.c.l.b16 %v366
        %v467 = vunpack.c.h.b16 %v366
        %v468 = vunpack.c.l.b16 %v367
        %v469 = vunpack.c.h.b16 %v367
        %v470 = vunpack.c.l.b16 %v368
        %v471 = vunpack.c.h.b16 %v368
        %v472 = vunpack.c.l.b16 %v369
        %v473 = vunpack.c.h.b16 %v369
        %v474 = vunpack.c.l.b16 %v370
        %v475 = vunpack.c.h.b16 %v370
        %v476 = vunpack.c.l.b16 %v371
        %v477 = vunpack.c.h.b16 %v371
        %v478 = vunpack.c.l.b16 %v372
        %v479 = vunpack.c.h.b16 %v372
        %v480 = vunpack.c.l.b16 %v373
        %v481 = vunpack.c.h.b16 %v373
        %v482 = vpack.c.b16 %v452, %v450
        %v483 = vpack.c.b16 %v453, %v451
        %v484 = vpack.c.b16 %v456, %v454
        %v485 = vpack.c.b16 %v457, %v455
        %v486 = vpack.c.b16 %v460, %v458
        %v487 = vpack.c.b16 %v461, %v459
        %v488 = vpack.c.b16 %v464, %v462
        %v489 = vpack.c.b16 %v465, %v463
        %v490 = vpack.c.b16 %v468, %v466
        %v491 = vpack.c.b16 %v469, %v467
        %v492 = vpack.c.b16 %v472, %v470
        %v493 = vpack.c.b16 %v473, %v471
        %v494 = vpack.c.b16 %v476, %v474
        %v495 = vpack.c.b16 %v477, %v475
        %v496 = vpack.c.b16 %v480, %v478
        %v497 = vpack.c.b16 %v481, %v479
        %514 = vmatprep.subr.bf16.mxu0 %v483
        %515 = vmatpush1.bf16.msra.mxu0 %v482
        %516 = vmatprep.subr.bf16.mxu0 %v485
        %517 = vmatpush1.bf16.msra.mxu0 %v484
        %518 = vmatprep.subr.bf16.mxu0 %v487
        %519 = vmatpush1.bf16.msra.mxu0 %v486
        %520 = vmatprep.subr.bf16.mxu0 %v489
        %521 = vmatpush1.bf16.msra.mxu0 %v488
        %522 = vmatprep.subr.bf16.mxu0 %v491
        %523 = vmatpush1.bf16.msra.mxu0 %v490
        %524 = vmatprep.subr.bf16.mxu0 %v493
        %525 = vmatpush1.bf16.msra.mxu0 %v492
        %526 = vmatprep.subr.bf16.mxu0 %v495
        %527 = vmatpush1.bf16.msra.mxu0 %v494
        %528 = vmatprep.subr.bf16.mxu0 %v497
        %529 = vmatpush1.bf16.msra.mxu0 %v496
        %530 = vmatprep.subr.bf16.mxu0 0
        %531 = vmatpush1.bf16.msra.mxu0 0
        %532 = vmatprep.subr.bf16.mxu0 0
        %533 = vmatpush1.bf16.msra.mxu0 0
        %534 = vmatprep.subr.bf16.mxu0 0
        %535 = vmatpush1.bf16.msra.mxu0 0
        %536 = vmatprep.subr.bf16.mxu0 0
        %537 = vmatpush1.bf16.msra.mxu0 0
        %538 = vmatprep.subr.bf16.mxu0 0
        %539 = vmatpush1.bf16.msra.mxu0 0
        %540 = vmatprep.subr.bf16.mxu0 0
        %541 = vmatpush1.bf16.msra.mxu0 0
        %542 = vmatprep.subr.bf16.mxu0 0
        %543 = vmatpush1.bf16.msra.mxu0 0
        %544 = vmatprep.subr.bf16.mxu0 0
        %545 = vmatpush1.bf16.msra.mxu0 0
        %546 = vmatprep.mubr.bf16.mxu0 0
        %547 = vmatmul.mubr.bf16.gmra.mrb[0].mxu0 %v418
        %v548 = vpop.f32.mrb[0].mxu0
        %v549 = vadd.f32 %v379, %v548
        %v550 = vpop.f32.mrb[0].mxu0
        %v551 = vadd.f32 %v383, %v550
        %v552 = vpop.f32.mrb[0].mxu0
        %v553 = vadd.f32 %v379, %v552
        %v554 = vpop.f32.mrb[0].mxu0
        %v555 = vadd.f32 %v383, %v554
        %556 = vmatprep.mubr.bf16.mxu0 0
        %557 = vmatmul.mubr.bf16.gmra.mrb[0].mxu0 %v419
        %v558 = vpop.f32.mrb[0].mxu0
        %v559 = vadd.f32 %v379, %v558
        %v560 = vpop.f32.mrb[0].mxu0
        %v561 = vadd.f32 %v383, %v560
        %v562 = vpop.f32.mrb[0].mxu0
        %v563 = vadd.f32 %v379, %v562
        %v564 = vpop.f32.mrb[0].mxu0
        %v565 = vadd.f32 %v383, %v564
        %566 = vmatprep.mubr.bf16.mxu0 0
        %567 = vmatmul.mubr.bf16.gmra.mrb[0].mxu0 %v420
        %v568 = vpop.f32.mrb[0].mxu0
        %v569 = vadd.f32 %v379, %v568
        %v570 = vpop.f32.mrb[0].mxu0
        %v571 = vadd.f32 %v383, %v570
        %v572 = vpop.f32.mrb[0].mxu0
        %v573 = vadd.f32 %v379, %v572
        %v574 = vpop.f32.mrb[0].mxu0
        %v575 = vadd.f32 %v383, %v574
        %576 = vmatprep.mubr.bf16.mxu0 0
        %577 = vmatmul.mubr.bf16.gmra.mrb[0].mxu0 %v421
        %v578 = vpop.f32.mrb[0].mxu0
        %v579 = vadd.f32 %v379, %v578
        %v580 = vpop.f32.mrb[0].mxu0
        %v581 = vadd.f32 %v383, %v580
        %v582 = vpop.f32.mrb[0].mxu0
        %v583 = vadd.f32 %v379, %v582
        %v584 = vpop.f32.mrb[0].mxu0
        %v585 = vadd.f32 %v383, %v584
        %586 = vmatprep.mubr.bf16.mxu0 0
        %587 = vmatmul.mubr.bf16.gmra.mrb[0].mxu0 %v422
        %v588 = vpop.f32.mrb[0].mxu0
        %v589 = vadd.f32 %v379, %v588
        %v590 = vpop.f32.mrb[0].mxu0
        %v591 = vadd.f32 %v383, %v590
        %v592 = vpop.f32.mrb[0].mxu0
        %v593 = vadd.f32 %v379, %v592
        %v594 = vpop.f32.mrb[0].mxu0
        %v595 = vadd.f32 %v383, %v594
        %596 = vmatprep.mubr.bf16.mxu0 0
        %597 = vmatmul.mubr.bf16.gmra.mrb[0].mxu0 %v423
        %v598 = vpop.f32.mrb[0].mxu0
        %v599 = vadd.f32 %v379, %v598
        %v600 = vpop.f32.mrb[0].mxu0
        %v601 = vadd.f32 %v383, %v600
        %v602 = vpop.f32.mrb[0].mxu0
        %v603 = vadd.f32 %v379, %v602
        %v604 = vpop.f32.mrb[0].mxu0
        %v605 = vadd.f32 %v383, %v604
        %606 = vmatprep.mubr.bf16.mxu0 0
        %607 = vmatmul.mubr.bf16.gmra.mrb[0].mxu0 %v424
        %v608 = vpop.f32.mrb[0].mxu0
        %v609 = vadd.f32 %v379, %v608
        %v610 = vpop.f32.mrb[0].mxu0
        %v611 = vadd.f32 %v383, %v610
        %v612 = vpop.f32.mrb[0].mxu0
        %v613 = vadd.f32 %v379, %v612
        %v614 = vpop.f32.mrb[0].mxu0
        %v615 = vadd.f32 %v383, %v614
        %616 = vmatprep.mubr.bf16.mxu0 0
        %617 = vmatmul.mubr.bf16.gmra.mrb[0].mxu0 %v425
        %v618 = vpop.f32.mrb[0].mxu0
        %v619 = vadd.f32 %v379, %v618
        %v620 = vpop.f32.mrb[0].mxu0
        %v621 = vadd.f32 %v383, %v620
        %v622 = vpop.f32.mrb[0].mxu0
        %v623 = vadd.f32 %v379, %v622
        %v624 = vpop.f32.mrb[0].mxu0
        %v625 = vadd.f32 %v383, %v624
        %626 = vdwg.mxu0
        %v627 = vld [vmem:[%s328] sm:$0xff]
        %v628 = vld [vmem:[%s328 + $0x8] sm:$0xff]
        %v629 = vld [vmem:[%s328 + $0x10] sm:$0xff]
        %v630 = vld [vmem:[%s328 + $0x18] sm:$0xff]
        %v631 = vld [vmem:[%s328 + $0x20] sm:$0xff]
        %v632 = vld [vmem:[%s328 + $0x28] sm:$0xff]
        %v633 = vld [vmem:[%s328 + $0x30] sm:$0xff]
        %v634 = vld [vmem:[%s328 + $0x38] sm:$0xff]
        %v635 = vld [vmem:[%s328 + $0x40] sm:$0xff]
        %v636 = vld [vmem:[%s328 + $0x48] sm:$0xff]
        %v637 = vld [vmem:[%s328 + $0x50] sm:$0xff]
        %v638 = vld [vmem:[%s328 + $0x58] sm:$0xff]
        %v639 = vld [vmem:[%s328 + $0x60] sm:$0xff]
        %v640 = vld [vmem:[%s328 + $0x68] sm:$0xff]
        %v641 = vld [vmem:[%s328 + $0x70] sm:$0xff]
        %v642 = vld [vmem:[%s328 + $0x78] sm:$0xff]
        %v643 = vlaneseq
        %v644 = vand.u32 %v643, 127
        %645 = vset.pattern.permute.xlu0 0
        %646 = vperm.xlu0 %645, %v627
        %v647 = vpop.permute.xlu0 %646
        %648 = vset.pattern.permute.xlu0 0
        %649 = vperm.xlu0 %648, %v628
        %v650 = vpop.permute.xlu0 %649
        %651 = vset.pattern.permute.xlu0 0
        %652 = vperm.xlu0 %651, %v629
        %v653 = vpop.permute.xlu0 %652
        %654 = vset.pattern.permute.xlu0 0
        %655 = vperm.xlu0 %654, %v630
        %v656 = vpop.permute.xlu0 %655
        %657 = vset.pattern.permute.xlu0 0
        %658 = vperm.xlu0 %657, %v631
        %v659 = vpop.permute.xlu0 %658
        %660 = vset.pattern.permute.xlu0 0
        %661 = vperm.xlu0 %660, %v632
        %v662 = vpop.permute.xlu0 %661
        %663 = vset.pattern.permute.xlu0 0
        %664 = vperm.xlu0 %663, %v633
        %v665 = vpop.permute.xlu0 %664
        %666 = vset.pattern.permute.xlu0 0
        %667 = vperm.xlu0 %666, %v634
        %v668 = vpop.permute.xlu0 %667
        %669 = vset.pattern.permute.xlu0 0
        %670 = vperm.xlu0 %669, %v635
        %v671 = vpop.permute.xlu0 %670
        %672 = vset.pattern.permute.xlu0 0
        %673 = vperm.xlu0 %672, %v636
        %v674 = vpop.permute.xlu0 %673
        %675 = vset.pattern.permute.xlu0 0
        %676 = vperm.xlu0 %675, %v637
        %v677 = vpop.permute.xlu0 %676
        %678 = vset.pattern.permute.xlu0 0
        %679 = vperm.xlu0 %678, %v638
        %v680 = vpop.permute.xlu0 %679
        %681 = vset.pattern.permute.xlu0 0
        %682 = vperm.xlu0 %681, %v639
        %v683 = vpop.permute.xlu0 %682
        %684 = vset.pattern.permute.xlu0 0
        %685 = vperm.xlu0 %684, %v640
        %v686 = vpop.permute.xlu0 %685
        %687 = vset.pattern.permute.xlu0 0
        %688 = vperm.xlu0 %687, %v641
        %v689 = vpop.permute.xlu0 %688
        %690 = vset.pattern.permute.xlu0 0
        %691 = vperm.xlu0 %690, %v642
        %v692 = vpop.permute.xlu0 %691
        %vm693 = vcmp.eq.s32.totalorder %v644, %v647
        %vm694 = vcmp.eq.s32.totalorder %v644, %v650
        %vm695 = vcmp.eq.s32.totalorder %v644, %v653
        %vm696 = vcmp.eq.s32.totalorder %v644, %v656
        %vm697 = vcmp.eq.s32.totalorder %v644, %v659
        %vm698 = vcmp.eq.s32.totalorder %v644, %v662
        %vm699 = vcmp.eq.s32.totalorder %v644, %v665
        %vm700 = vcmp.eq.s32.totalorder %v644, %v668
        %vm701 = vcmp.eq.s32.totalorder %v644, %v671
        %vm702 = vcmp.eq.s32.totalorder %v644, %v674
        %vm703 = vcmp.eq.s32.totalorder %v644, %v677
        %vm704 = vcmp.eq.s32.totalorder %v644, %v680
        %vm705 = vcmp.eq.s32.totalorder %v644, %v683
        %vm706 = vcmp.eq.s32.totalorder %v644, %v686
        %vm707 = vcmp.eq.s32.totalorder %v644, %v689
        %vm708 = vcmp.eq.s32.totalorder %v644, %v692
        %v709 = vsel %vm693, 1, 0
        %v710 = vsel %vm694, 1, 0
        %v711 = vsel %vm695, 1, 0
        %v712 = vsel %vm696, 1, 0
        %v713 = vsel %vm697, 1, 0
        %v714 = vsel %vm698, 1, 0
        %v715 = vsel %vm699, 1, 0
        %v716 = vsel %vm700, 1, 0
        %v717 = vsel %vm701, 1, 0
        %v718 = vsel %vm702, 1, 0
        %v719 = vsel %vm703, 1, 0
        %v720 = vsel %vm704, 1, 0
        %v721 = vsel %vm705, 1, 0
        %v722 = vsel %vm706, 1, 0
        %v723 = vsel %vm707, 1, 0
        %v724 = vsel %vm708, 1, 0
        %v725 = vcvt.s32.f32 %v709
        %v726 = vcvt.s32.f32 %v710
        %v727 = vcvt.s32.f32 %v711
        %v728 = vcvt.s32.f32 %v712
        %v729 = vcvt.s32.f32 %v713
        %v730 = vcvt.s32.f32 %v714
        %v731 = vcvt.s32.f32 %v715
        %v732 = vcvt.s32.f32 %v716
        %v733 = vcvt.s32.f32 %v717
        %v734 = vcvt.s32.f32 %v718
        %v735 = vcvt.s32.f32 %v719
        %v736 = vcvt.s32.f32 %v720
        %v737 = vcvt.s32.f32 %v721
        %v738 = vcvt.s32.f32 %v722
        %v739 = vcvt.s32.f32 %v723
        %v740 = vcvt.s32.f32 %v724
        %v741 = vld [vmem:[%s297] sm:$0xff]
        %v742 = vld [vmem:[%s297 + $0x8] sm:$0xff]
        %743 = vxpose.xlu0.b32.start [1/16] %v725, 128
        %744 = vxpose.xlu0.b32.cont [2/16] %v726, 128
        %745 = vxpose.xlu0.b32.cont [3/16] %v727, 128
        %746 = vxpose.xlu0.b32.cont [4/16] %v728, 128
        %747 = vxpose.xlu0.b32.cont [5/16] %v729, 128
        %748 = vxpose.xlu0.b32.cont [6/16] %v730, 128
        %749 = vxpose.xlu0.b32.cont [7/16] %v731, 128
        %750 = vxpose.xlu0.b32.cont [8/16] %v732, 128
        %751 = vxpose.xlu0.b32.cont [9/16] %v733, 128
        %752 = vxpose.xlu0.b32.cont [10/16] %v734, 128
        %753 = vxpose.xlu0.b32.cont [11/16] %v735, 128
        %754 = vxpose.xlu0.b32.cont [12/16] %v736, 128
        %755 = vxpose.xlu0.b32.cont [13/16] %v737, 128
        %756 = vxpose.xlu0.b32.cont [14/16] %v738, 128
        %757 = vxpose.xlu0.b32.cont [15/16] %v739, 128
        %758 = vxpose.xlu0.b32.end [16/16] %v740, 128
        %v759 = vpop.trf.xlu0
        %v760 = vpop.trf.xlu0
        %v761 = vpop.trf.xlu0
        %v762 = vpop.trf.xlu0
        %v763 = vpop.trf.xlu0
        %v764 = vpop.trf.xlu0
        %v765 = vpop.trf.xlu0
        %v766 = vpop.trf.xlu0
        %v767 = vpop.trf.xlu0
        %v768 = vpop.trf.xlu0
        %v769 = vpop.trf.xlu0
        %v770 = vpop.trf.xlu0
        %v771 = vpop.trf.xlu0
        %v772 = vpop.trf.xlu0
        %v773 = vpop.trf.xlu0
        %v774 = vpop.trf.xlu0
        %775 = vmatprep.subr.mxu0 %v551
        %776 = vmatpush1.msra.mxu0 %v549
        %777 = vmatprep.subr.mxu0 %v555
        %778 = vmatpush1.msra.mxu0 %v553
        %779 = vmatprep.subr.mxu0 %v561
        %780 = vmatpush1.msra.mxu0 %v559
        %781 = vmatprep.subr.mxu0 %v565
        %782 = vmatpush1.msra.mxu0 %v563
        %783 = vmatprep.subr.mxu0 %v571
        %784 = vmatpush1.msra.mxu0 %v569
        %785 = vmatprep.subr.mxu0 %v575
        %786 = vmatpush1.msra.mxu0 %v573
        %787 = vmatprep.subr.mxu0 %v581
        %788 = vmatpush1.msra.mxu0 %v579
        %789 = vmatprep.subr.mxu0 %v585
        %790 = vmatpush1.msra.mxu0 %v583
        %791 = vmatprep.subr.mxu0 %v591
        %792 = vmatpush1.msra.mxu0 %v589
        %793 = vmatprep.subr.mxu0 %v595
        %794 = vmatpush1.msra.mxu0 %v593
        %795 = vmatprep.subr.mxu0 %v601
        %796 = vmatpush1.msra.mxu0 %v599
        %797 = vmatprep.subr.mxu0 %v605
        %798 = vmatpush1.msra.mxu0 %v603
        %799 = vmatprep.subr.mxu0 %v611
        %800 = vmatpush1.msra.mxu0 %v609
        %801 = vmatprep.subr.mxu0 %v615
        %802 = vmatpush1.msra.mxu0 %v613
        %803 = vmatprep.subr.mxu0 %v621
        %804 = vmatpush1.msra.mxu0 %v619
        %805 = vmatprep.subr.mxu0 %v625
        %806 = vmatpush1.msra.mxu0 %v623
        %807 = vmatprep.subr.mxu0 0.0
        %808 = vmatpush1.msra.mxu0 0.0
        %809 = vmatprep.subr.mxu0 0.0
        %810 = vmatpush1.msra.mxu0 0.0
        %811 = vmatprep.subr.mxu0 0.0
        %812 = vmatpush1.msra.mxu0 0.0
        %813 = vmatprep.subr.mxu0 0.0
        %814 = vmatpush1.msra.mxu0 0.0
        %815 = vmatprep.subr.mxu0 0.0
        %816 = vmatpush1.msra.mxu0 0.0
        %817 = vmatprep.subr.mxu0 0.0
        %818 = vmatpush1.msra.mxu0 0.0
        %819 = vmatprep.subr.mxu0 0.0
        %820 = vmatpush1.msra.mxu0 0.0
        %821 = vmatprep.subr.mxu0 0.0
        %822 = vmatpush1.msra.mxu0 0.0
        %823 = vmatprep.subr.mxu0 0.0
        %824 = vmatpush1.msra.mxu0 0.0
        %825 = vmatprep.subr.mxu0 0.0
        %826 = vmatpush1.msra.mxu0 0.0
        %827 = vmatprep.subr.mxu0 0.0
        %828 = vmatpush1.msra.mxu0 0.0
        %829 = vmatprep.subr.mxu0 0.0
        %830 = vmatpush1.msra.mxu0 0.0
        %831 = vmatprep.subr.mxu0 0.0
        %832 = vmatpush1.msra.mxu0 0.0
        %833 = vmatprep.subr.mxu0 0.0
        %834 = vmatpush1.msra.mxu0 0.0
        %835 = vmatprep.subr.mxu0 0.0
        %836 = vmatpush1.msra.mxu0 0.0
        %837 = vmatprep.subr.mxu0 0.0
        %838 = vmatpush1.msra.mxu0 0.0
        %839 = vmatprep.mubr.f32.mxu0 0.0
        %840 = vmatmul.mubr.f32.gmra.mrb[0].mxu0 %v759
        %v841 = vpop.f32.mrb[0].mxu0
        %v842 = vadd.f32 0.0, %v841
        %v843 = vpop.f32.mrb[0].mxu0
        %v844 = vadd.f32 0.0, %v843
        %845 = vdwg.mxu0
        %v846 = vadd.f32 %v741, %v842
        %v847 = vadd.f32 %v742, %v844
        %848 = vst [vmem:[%s297] sm:$0xff] %v846
        %849 = vst [vmem:[%s297 + $0x8] sm:$0xff] %v847
        %v850 = vld [vmem:[%s304] sm:$0xff]
        %v851 = vld [vmem:[%s304 + $0x8] sm:$0xff]
        %v852 = vmul.f32 %v549, %v549
        %v853 = vmul.f32 %v551, %v551
        %v854 = vmul.f32 %v553, %v553
        %v855 = vmul.f32 %v555, %v555
        %v856 = vmul.f32 %v559, %v559
        %v857 = vmul.f32 %v561, %v561
        %v858 = vmul.f32 %v563, %v563
        %v859 = vmul.f32 %v565, %v565
        %v860 = vmul.f32 %v569, %v569
        %v861 = vmul.f32 %v571, %v571
        %v862 = vmul.f32 %v573, %v573
        %v863 = vmul.f32 %v575, %v575
        %v864 = vmul.f32 %v579, %v579
        %v865 = vmul.f32 %v581, %v581
        %v866 = vmul.f32 %v583, %v583
        %v867 = vmul.f32 %v585, %v585
        %v868 = vmul.f32 %v589, %v589
        %v869 = vmul.f32 %v591, %v591
        %v870 = vmul.f32 %v593, %v593
        %v871 = vmul.f32 %v595, %v595
        %v872 = vmul.f32 %v599, %v599
        %v873 = vmul.f32 %v601, %v601
        %v874 = vmul.f32 %v603, %v603
        %v875 = vmul.f32 %v605, %v605
        %v876 = vmul.f32 %v609, %v609
        %v877 = vmul.f32 %v611, %v611
        %v878 = vmul.f32 %v613, %v613
        %v879 = vmul.f32 %v615, %v615
        %v880 = vmul.f32 %v619, %v619
        %v881 = vmul.f32 %v621, %v621
        %v882 = vmul.f32 %v623, %v623
        %v883 = vmul.f32 %v625, %v625
        %884 = vmatprep.subr.mxu0 %v853
        %885 = vmatpush1.msra.mxu0 %v852
        %886 = vmatprep.subr.mxu0 %v855
        %887 = vmatpush1.msra.mxu0 %v854
        %888 = vmatprep.subr.mxu0 %v857
        %889 = vmatpush1.msra.mxu0 %v856
        %890 = vmatprep.subr.mxu0 %v859
        %891 = vmatpush1.msra.mxu0 %v858
        %892 = vmatprep.subr.mxu0 %v861
        %893 = vmatpush1.msra.mxu0 %v860
        %894 = vmatprep.subr.mxu0 %v863
        %895 = vmatpush1.msra.mxu0 %v862
        %896 = vmatprep.subr.mxu0 %v865
        %897 = vmatpush1.msra.mxu0 %v864
        %898 = vmatprep.subr.mxu0 %v867
        %899 = vmatpush1.msra.mxu0 %v866
        %900 = vmatprep.subr.mxu0 %v869
        %901 = vmatpush1.msra.mxu0 %v868
        %902 = vmatprep.subr.mxu0 %v871
        %903 = vmatpush1.msra.mxu0 %v870
        %904 = vmatprep.subr.mxu0 %v873
        %905 = vmatpush1.msra.mxu0 %v872
        %906 = vmatprep.subr.mxu0 %v875
        %907 = vmatpush1.msra.mxu0 %v874
        %908 = vmatprep.subr.mxu0 %v877
        %909 = vmatpush1.msra.mxu0 %v876
        %910 = vmatprep.subr.mxu0 %v879
        %911 = vmatpush1.msra.mxu0 %v878
        %912 = vmatprep.subr.mxu0 %v881
        %913 = vmatpush1.msra.mxu0 %v880
        %914 = vmatprep.subr.mxu0 %v883
        %915 = vmatpush1.msra.mxu0 %v882
        %916 = vmatprep.subr.mxu0 0.0
        %917 = vmatpush1.msra.mxu0 0.0
        %918 = vmatprep.subr.mxu0 0.0
        %919 = vmatpush1.msra.mxu0 0.0
        %920 = vmatprep.subr.mxu0 0.0
        %921 = vmatpush1.msra.mxu0 0.0
        %922 = vmatprep.subr.mxu0 0.0
        %923 = vmatpush1.msra.mxu0 0.0
        %924 = vmatprep.subr.mxu0 0.0
        %925 = vmatpush1.msra.mxu0 0.0
        %926 = vmatprep.subr.mxu0 0.0
        %927 = vmatpush1.msra.mxu0 0.0
        %928 = vmatprep.subr.mxu0 0.0
        %929 = vmatpush1.msra.mxu0 0.0
        %930 = vmatprep.subr.mxu0 0.0
        %931 = vmatpush1.msra.mxu0 0.0
        %932 = vmatprep.subr.mxu0 0.0
        %933 = vmatpush1.msra.mxu0 0.0
        %934 = vmatprep.subr.mxu0 0.0
        %935 = vmatpush1.msra.mxu0 0.0
        %936 = vmatprep.subr.mxu0 0.0
        %937 = vmatpush1.msra.mxu0 0.0
        %938 = vmatprep.subr.mxu0 0.0
        %939 = vmatpush1.msra.mxu0 0.0
        %940 = vmatprep.subr.mxu0 0.0
        %941 = vmatpush1.msra.mxu0 0.0
        %942 = vmatprep.subr.mxu0 0.0
        %943 = vmatpush1.msra.mxu0 0.0
        %944 = vmatprep.subr.mxu0 0.0
        %945 = vmatpush1.msra.mxu0 0.0
        %946 = vmatprep.subr.mxu0 0.0
        %947 = vmatpush1.msra.mxu0 0.0
        %948 = vmatprep.mubr.f32.mxu0 0.0
        %949 = vmatmul.mubr.f32.gmra.mrb[0].mxu0 %v759
        %v950 = vpop.f32.mrb[0].mxu0
        %v951 = vadd.f32 0.0, %v950
        %v952 = vpop.f32.mrb[0].mxu0
        %v953 = vadd.f32 0.0, %v952
        %954 = vdwg.mxu0
        %v955 = vadd.f32 %v850, %v951
        %v956 = vadd.f32 %v851, %v953
        %957 = vst [vmem:[%s304] sm:$0xff] %v955
        %958 = vst [vmem:[%s304 + $0x8] sm:$0xff] %v956
        %v959 = vld [vmem:[%s311] sm:$0xff]
        %vm960 = vcmask 64512
        %v961 = vsel %vm960, %v725, 0.0
        %v962 = vsel %vm960, %v726, 0.0
        %v963 = vadd.f32 %v961, %v962
        %v964 = vsel %vm960, %v727, 0.0
        %v965 = vadd.f32 %v963, %v964
        %v966 = vsel %vm960, %v728, 0.0
        %v967 = vadd.f32 %v965, %v966
        %v968 = vsel %vm960, %v729, 0.0
        %v969 = vadd.f32 %v967, %v968
        %v970 = vsel %vm960, %v730, 0.0
        %v971 = vadd.f32 %v969, %v970
        %v972 = vsel %vm960, %v731, 0.0
        %v973 = vadd.f32 %v971, %v972
        %v974 = vsel %vm960, %v732, 0.0
        %v975 = vadd.f32 %v973, %v974
        %v976 = vsel %vm960, %v733, 0.0
        %v977 = vadd.f32 %v975, %v976
        %v978 = vsel %vm960, %v734, 0.0
        %v979 = vadd.f32 %v977, %v978
        %v980 = vsel %vm960, %v735, 0.0
        %v981 = vadd.f32 %v979, %v980
        %v982 = vsel %vm960, %v736, 0.0
        %v983 = vadd.f32 %v981, %v982
        %v984 = vsel %vm960, %v737, 0.0
        %v985 = vadd.f32 %v983, %v984
        %v986 = vsel %vm960, %v738, 0.0
        %v987 = vadd.f32 %v985, %v986
        %v988 = vsel %vm960, %v739, 0.0
        %v989 = vadd.f32 %v987, %v988
        %v990 = vsel %vm960, %v740, 0.0
        %v991 = vadd.f32 %v989, %v990
        %v992 = vrot.slane %v991, 4
        %v993 = vadd.f32 %v991, %v992
        %v994 = vrot.slane %v993, 2
        %v995 = vadd.f32 %v993, %v994
        %v996 = vrot.slane %v995, 1
        %v997 = vadd.f32 %v995, %v996
        %999 = vbcast.lane.b32.xlu0 %v997, 256
        %v1000 = vpop.permute.xlu0 %999
        %v1001 = vadd.f32 %v959, %v1000
        %1002 = vst [vmem:[%s311] sm:$0xff] %v1001
        %s1003 = sand.u32 %s146, 1
        %s1004 = scalar_lea.sflag [#allocation3], %s1003
        %s1005 = sand.u32 %s146, 1
        %s1006 = smul.addr %s1005, 16
        %s1007 = scalar_lea.vmem [#allocation2], %s1006
        %s1008 = sand.u32 %s24, 1
        %s1009 = scalar_lea.sflag [#allocation5], %s1008
        %s1010 = sand.u32 %s172, 1
        %s1011 = smul.addr %s1010, 16
        %s1012 = scalar_lea.vmem [#allocation4], %s1011
        %s1013 = sand.u32 %s24, 1
        %s1014 = scalar_lea.sflag [#allocation5], %s1013
        %s1015 = sand.u32 %s198, 1
        %s1016 = smul.addr %s1015, 8
        %s1017 = scalar_lea.vmem [#allocation6], %s1016
        // Predicated region
        $region41: #{tpu_custom_call.1} parent=35 // pred_check
          %p1018 = pneg %p156
        $region42: #{tpu_custom_call.1} parent=35 // pred_check_branch
          %1020 = sbr.rel (%p1018) target = $region44
        $region43: #{tpu_custom_call.1} parent=35 // pred_region
          %s1022 = ssub.s32 256, 256
          %1023 = vsyncadd %s1004, %s1022
          %s1024 = smul.addr %s28, 2
          %s1025 = smul.addr %s1024, 128
          %s1026 = scalar_lea.hbm %s4, %s1025
          %s1028 = sshll.u32 %s1007, 4
          %s1029 = int_to_ptr.vmem [resolvable:$true] %s1028
          %1031 = dma.vmem_to_hbm [thread:$0]  %s1029, 256, %s1026, %s1004
        $region44: #{tpu_custom_call.1} parent=35 // pred_fallthru
          _
        // Predicated region
        $region45: #{tpu_custom_call.1} parent=35 // pred_check
          %p1032 = pneg %p182
        $region46: #{tpu_custom_call.1} parent=35 // pred_check_branch
          %1034 = sbr.rel (%p1032) target = $region48
        $region47: #{tpu_custom_call.1} parent=35 // pred_region
          %s1036 = ssub.s32 256, 256
          %1037 = vsyncadd %s1009, %s1036
          %s1038 = smul.addr %s28, 2
          %s1039 = smul.addr %s1038, 128
          %s1040 = scalar_lea.hbm %s5, %s1039
          %s1042 = sshll.u32 %s1012, 4
          %s1043 = int_to_ptr.vmem [resolvable:$true] %s1042
          %1045 = dma.vmem_to_hbm [thread:$0]  %s1043, 256, %s1040, %s1009
        $region48: #{tpu_custom_call.1} parent=35 // pred_fallthru
          _
        // Predicated region
        $region49: #{tpu_custom_call.1} parent=35 // pred_check
          %p1046 = pneg %p208
        $region50: #{tpu_custom_call.1} parent=35 // pred_check_branch
          %1048 = sbr.rel (%p1046) target = $region52
        $region51: #{tpu_custom_call.1} parent=35 // pred_region
          %s1050 = ssub.s32 128, 128
          %1051 = vsyncadd %s1014, %s1050
          %s1052 = smul.addr %s28, 128
          %s1053 = scalar_lea.hbm %s6, %s1052
          %s1055 = sshll.u32 %s1017, 4
          %s1056 = int_to_ptr.vmem [resolvable:$true] %s1055
          %1058 = dma.vmem_to_hbm [thread:$0]  %s1056, 128, %s1053, %s1014
        $region52: #{tpu_custom_call.1} parent=35 // pred_fallthru
          _
      $region36: #{tpu_custom_call.1} parent=5 // pred_fallthru
        _
      %p1059 = scmp.le.s32.totalorder 2, %s19
      // Predicated region
      $region53: #{tpu_custom_call.1} parent=5 // pred_check
        %p1060 = pneg %p1059
      $region54: #{tpu_custom_call.1} parent=5 // pred_check_branch
        %1062 = sbr.rel (%p1060) target = $region56
      $region55: #{tpu_custom_call.1} parent=5 // pred_region
        %s1063 = ssub.s32 %s19, 2
        // Predicated region
        $region57: #{tpu_custom_call.1} parent=55 // pred_check
          %p1064 = pneg %p162
        $region58: #{tpu_custom_call.1} parent=55 // pred_check_branch
          %1066 = sbr.rel (%p1064) target = $region60
        $region59: #{tpu_custom_call.1} parent=55 // pred_region
          %s1067 = sand.u32 %s147, 1
          %s1068 = scalar_lea.sflag [#allocation3], %s1067
          %s1069 = sand.u32 %s147, 1
          %s1070 = smul.addr %s1069, 16
          %s1071 = scalar_lea.vmem [#allocation2], %s1070
          %1072 = dma.done %s1068, 256
        $region60: #{tpu_custom_call.1} parent=55 // pred_fallthru
          _
        // Predicated region
        $region61: #{tpu_custom_call.1} parent=55 // pred_check
          %p1073 = pneg %p188
        $region62: #{tpu_custom_call.1} parent=55 // pred_check_branch
          %1075 = sbr.rel (%p1073) target = $region64
        $region63: #{tpu_custom_call.1} parent=55 // pred_region
          %s1076 = sand.u32 %s25, 1
          %s1077 = scalar_lea.sflag [#allocation5], %s1076
          %s1078 = sand.u32 %s173, 1
          %s1079 = smul.addr %s1078, 16
          %s1080 = scalar_lea.vmem [#allocation4], %s1079
          %1081 = dma.done %s1077, 256
        $region64: #{tpu_custom_call.1} parent=55 // pred_fallthru
          _
        // Predicated region
        $region65: #{tpu_custom_call.1} parent=55 // pred_check
          %p1082 = pneg %p214
        $region66: #{tpu_custom_call.1} parent=55 // pred_check_branch
          %1084 = sbr.rel (%p1082) target = $region68
        $region67: #{tpu_custom_call.1} parent=55 // pred_region
          %s1085 = sand.u32 %s25, 1
          %s1086 = scalar_lea.sflag [#allocation5], %s1085
          %s1087 = sand.u32 %s199, 1
          %s1088 = smul.addr %s1087, 8
          %s1089 = scalar_lea.vmem [#allocation6], %s1088
          %1090 = dma.done %s1086, 128
        $region68: #{tpu_custom_call.1} parent=55 // pred_fallthru
          _
      $region56: #{tpu_custom_call.1} parent=5 // pred_fallthru
        _
    $region6: #{tpu_custom_call.1} parent=1 // loop_footer
      %s23 = sadd.s32 1, %s19
    $region7: #{tpu_custom_call.1} parent=1 // loop_footer_branch
      %18 = sbr.rel target = $region3
    $region8: #{tpu_custom_call.1} parent=1 // loop_exit
      _
    %1091 = vsyncpa [#allocation3], 1
    %s1092 = scalar_lea.sflag [#allocation3], 1
    %1093 = vsyncpa %s1092, 1
    %1094 = vsyncpa [#allocation5], 1
    %s1095 = scalar_lea.sflag [#allocation5], 1
    %1096 = vsyncpa %s1095, 1

</llo_original>
